<compile_context>
chip_gen: v6e
topology: v6e:2x2x1
jax: 0.10.0
libtpu: 0.0.40
codegen_flags: <defaults>
</compile_context>

<pallas_src>
import jax
import jax.numpy as jnp
from jax.experimental import pallas as pl
from jax.experimental.pallas import tpu as pltpu

THRESH = 0.5
MARGIN = 0.1
SCALE_POS = 2.0
SCALE_NEG = 40.0
EPSILON = 1e-5


def ms_loss_kernel(feats_row_ref, feats_all_ref, lab_anchor_ref, lab_key_ref,
                   out_ref):
    q = feats_row_ref[...]                       # (TILE_B, D) — input dtype
    k = feats_all_ref[...]                       # (B, D)
    # sim tile = q @ k.T on the MXU, f32 accumulation regardless of input dtype
    sim = jax.lax.dot_general(
        q, k, (((1,), (1,)), ((), ())),
        preferred_element_type=jnp.float32)      # (TILE_B, B) f32

    # label-equality mask from int32 labels (built in-kernel, no (B,B) input)
    is_same = lab_anchor_ref[...] == lab_key_ref[...]   # (TILE_B,1)==(1,B)
    # pos_pair_: same label AND sim < 1 - eps  (drops the self-similarity)
    pos_mask = jnp.logical_and(is_same, sim < (1.0 - EPSILON))
    # neg_pair_: different label
    neg_mask = jnp.logical_not(is_same)

    # min(pos_pair_) / max(neg_pair_) per anchor row
    min_pos = jnp.min(jnp.where(pos_mask, sim, jnp.inf), axis=1, keepdims=True)
    max_neg = jnp.max(jnp.where(neg_mask, sim, -jnp.inf), axis=1, keepdims=True)

    # hard-pair mining
    neg_sel = jnp.logical_and(neg_mask, (sim + MARGIN) > min_pos)
    pos_sel = jnp.logical_and(pos_mask, (sim - MARGIN) < max_neg)

    cnt_pos = jnp.sum(pos_sel.astype(jnp.float32), axis=1, keepdims=True)
    cnt_neg = jnp.sum(neg_sel.astype(jnp.float32), axis=1, keepdims=True)

    # Single exp per element: pos_sel and neg_sel are disjoint, so choose the
    # exponent argument per element before calling exp.  Unselected elements
    # get -1e30 -> exp underflows to 0 (no overflow from unmasked pairs).
    x = sim - THRESH
    arg = jnp.where(pos_sel, -SCALE_POS * x,
                    jnp.where(neg_sel, SCALE_NEG * x, jnp.float32(-1e30)))
    e = jnp.exp(arg)
    pos_sum = jnp.sum(jnp.where(pos_sel, e, 0.0), axis=1, keepdims=True)
    neg_sum = jnp.sum(jnp.where(neg_sel, e, 0.0), axis=1, keepdims=True)

    pos_loss = (1.0 / SCALE_POS) * jnp.log(1.0 + pos_sum)
    neg_loss = (1.0 / SCALE_NEG) * jnp.log(1.0 + neg_sum)

    # rows with no mined positives or negatives are skipped (contribute 0)
    valid = jnp.logical_and(cnt_pos >= 1.0, cnt_neg >= 1.0)
    out_ref[...] = jnp.where(valid, pos_loss + neg_loss, 0.0)   # (TILE_B, 1)


def multi_similarity_loss(feats, labels):
    """feats: (B, D) float32/bfloat16, labels: (B,) int. Returns scalar f32."""
    assert feats.shape[0] == labels.shape[0]
    B, D = feats.shape
    labels = labels.astype(jnp.int32)

    # Lane-align the feature dim; zero padding is exact for feats @ feats.T.
    if D % 128 != 0:
        pad = (-D) % 128
        feats = jnp.pad(feats, ((0, 0), (0, pad)))
        D = D + pad

    # Row-tile: multiples of 128 keep every block (8,128)-aligned and give the
    # v7x megacore independent row tiles; otherwise fall back to one full tile.
    if B > 128 and B % 128 == 0:
        tile_b = 128
    else:
        tile_b = B
    num_tiles = B // tile_b

    lab_anchor = labels.reshape(B, 1)   # anchor (row) labels
    lab_key = labels.reshape(1, B)      # key (column) labels

    row_losses = pl.pallas_call(
        ms_loss_kernel,
        out_shape=jax.ShapeDtypeStruct((B, 1), jnp.float32),
        grid=(num_tiles,),
        in_specs=[
            pl.BlockSpec((tile_b, D), lambda i: (i, 0)),   # anchor rows
            pl.BlockSpec((B, D), lambda i: (0, 0)),        # all keys (resident)
            pl.BlockSpec((tile_b, 1), lambda i: (i, 0)),   # anchor labels
            pl.BlockSpec((1, B), lambda i: (0, 0)),        # all labels
        ],
        out_specs=pl.BlockSpec((tile_b, 1), lambda i: (i, 0)),
        compiler_params=pltpu.CompilerParams(
            dimension_semantics=("parallel",)),
    )(feats, feats, lab_anchor, lab_key)

    return jnp.sum(row_losses) / jnp.float32(B)


def _reference(feats, labels):
    """Plain-JAX reference matching the PyTorch loop semantics."""
    feats = feats.astype(jnp.float32)
    B = feats.shape[0]
    sim = feats @ feats.T
    same = labels[:, None] == labels[None, :]
    pos_mask = jnp.logical_and(same, sim < 1.0 - EPSILON)
    neg_mask = jnp.logical_not(same)
    min_pos = jnp.min(jnp.where(pos_mask, sim, jnp.inf), axis=1, keepdims=True)
    max_neg = jnp.max(jnp.where(neg_mask, sim, -jnp.inf), axis=1, keepdims=True)
    neg_sel = jnp.logical_and(neg_mask, sim + MARGIN > min_pos)
    pos_sel = jnp.logical_and(pos_mask, sim - MARGIN < max_neg)
    cnt_pos = pos_sel.sum(axis=1, keepdims=True)
    cnt_neg = neg_sel.sum(axis=1, keepdims=True)
    pos_sum = jnp.where(pos_sel, jnp.exp(-SCALE_POS * (sim - THRESH)), 0.0).sum(1, keepdims=True)
    neg_sum = jnp.where(neg_sel, jnp.exp(SCALE_NEG * (sim - THRESH)), 0.0).sum(1, keepdims=True)
    row = (1.0 / SCALE_POS) * jnp.log(1.0 + pos_sum) + (1.0 / SCALE_NEG) * jnp.log(1.0 + neg_sum)
    row = jnp.where(jnp.logical_and(cnt_pos >= 1, cnt_neg >= 1), row, 0.0)
    return jnp.sum(row) / B


if __name__ == "__main__":
    key = jax.random.PRNGKey(0)
    B, D = 8, 32
    feats = jax.random.normal(key, (B, D), dtype=jnp.float32)
    # L2-normalize embeddings (as the SCDA pipeline does before ms_loss)
    feats = feats / jnp.linalg.norm(feats, axis=1, keepdims=True)
    labels = jnp.array([0, 0, 1, 1, 2, 2, 3, 3], dtype=jnp.int32)

    loss = multi_similarity_loss(feats, labels)
    jax.block_until_ready(loss)

    ref = _reference(feats, labels)
    assert jnp.allclose(loss, ref, atol=1e-5, rtol=1e-5), (loss, ref)
    print("KERNEL_OK")
</pallas_src>

<mosaic_0001>
module attributes {stable_mosaic.version = 11 : i64} {
  func.func @ms_loss_kernel(%arg0: i32, %arg1: memref<8x128xf32, #tpu.memory_space<vmem>>, %arg2: memref<8x128xf32, #tpu.memory_space<vmem>>, %arg3: memref<8x1xi32, #tpu.memory_space<vmem>>, %arg4: memref<1x8xi32, #tpu.memory_space<vmem>>, %arg5: memref<8x1xf32, #tpu.memory_space<vmem>>) attributes {dimension_semantics = [#tpu.dimension_semantics<parallel>], iteration_bounds = array<i64: 1>, scalar_prefetch = 0 : i64, scratch_operands = 0 : i64, tpu.core_type = #tpu.core_type<tc>, window_params = [{transform_indices = @transform_0, window_bounds = array<i64: 8, 128>}, {pipeline_mode = #tpu.pipeline_mode<synchronous>, transform_indices = @transform_1, window_bounds = array<i64: 8, 128>}, {transform_indices = @transform_2, window_bounds = array<i64: 8, 1>}, {pipeline_mode = #tpu.pipeline_mode<synchronous>, transform_indices = @transform_3, window_bounds = array<i64: 1, 8>}, {transform_indices = @transform_4, window_bounds = array<i64: 8, 1>}]} {
    %c0 = arith.constant 0 : index
    %c0_0 = arith.constant 0 : index
    %0 = vector.load %arg1[%c0, %c0_0] : memref<8x128xf32, #tpu.memory_space<vmem>>, vector<8x128xf32>
    %c0_1 = arith.constant 0 : index
    %c0_2 = arith.constant 0 : index
    %1 = vector.load %arg2[%c0_1, %c0_2] : memref<8x128xf32, #tpu.memory_space<vmem>>, vector<8x128xf32>
    %cst = arith.constant dense<0.000000e+00> : vector<8x8xf32>
    %2 = tpu.matmul %0, %1, %cst {dimension_numbers = #tpu.dot_dimension_numbers<[1], [1], [0], [0], [0, 0, 1, 0], [], []>} : vector<8x128xf32>, vector<8x128xf32>, vector<8x8xf32> -> vector<8x8xf32>
    %c0_3 = arith.constant 0 : index
    %c0_4 = arith.constant 0 : index
    %3 = vector.load %arg3[%c0_3, %c0_4] : memref<8x1xi32, #tpu.memory_space<vmem>>, vector<8x1xi32>
    %c0_5 = arith.constant 0 : index
    %c0_6 = arith.constant 0 : index
    %4 = vector.load %arg4[%c0_5, %c0_6] : memref<1x8xi32, #tpu.memory_space<vmem>>, vector<1x8xi32>
    %5 = vector.broadcast %3 : vector<8x1xi32> to vector<8x8xi32>
    %6 = vector.broadcast %4 : vector<1x8xi32> to vector<8x8xi32>
    %7 = arith.cmpi eq, %5, %6 : vector<8x8xi32>
    %cst_7 = arith.constant 0.999989986 : f32
    %8 = vector.broadcast %cst_7 : f32 to vector<8x8xf32>
    %9 = arith.cmpf olt, %2, %8 : vector<8x8xf32>
    %10 = arith.andi %7, %9 : vector<8x8xi1>
    %cst_8 = arith.constant dense<true> : vector<8x8xi1>
    %11 = arith.xori %7, %cst_8 : vector<8x8xi1>
    %cst_9 = arith.constant 0x7F800000 : f32
    %12 = vector.broadcast %cst_9 : f32 to vector<8x8xf32>
    %13 = arith.select %10, %2, %12 : vector<8x8xi1>, vector<8x8xf32>
    %cst_10 = arith.constant dense<0x7F800000> : vector<8xf32>
    %14 = vector.multi_reduction <minimumf>, %13, %cst_10 [1] : vector<8x8xf32> to vector<8xf32>
    %15 = vector.shape_cast %14 : vector<8xf32> to vector<8x1xf32>
    %cst_11 = arith.constant 0xFF800000 : f32
    %16 = vector.broadcast %cst_11 : f32 to vector<8x8xf32>
    %17 = arith.select %11, %2, %16 : vector<8x8xi1>, vector<8x8xf32>
    %cst_12 = arith.constant dense<0xFF800000> : vector<8xf32>
    %18 = vector.multi_reduction <maximumf>, %17, %cst_12 [1] : vector<8x8xf32> to vector<8xf32>
    %19 = vector.shape_cast %18 : vector<8xf32> to vector<8x1xf32>
    %cst_13 = arith.constant 1.000000e-01 : f32
    %20 = vector.broadcast %cst_13 : f32 to vector<8x8xf32>
    %21 = arith.addf %2, %20 : vector<8x8xf32>
    %22 = vector.broadcast %15 : vector<8x1xf32> to vector<8x8xf32>
    %23 = arith.cmpf ogt, %21, %22 : vector<8x8xf32>
    %24 = arith.andi %11, %23 : vector<8x8xi1>
    %cst_14 = arith.constant 1.000000e-01 : f32
    %25 = vector.broadcast %cst_14 : f32 to vector<8x8xf32>
    %26 = arith.subf %2, %25 : vector<8x8xf32>
    %27 = vector.broadcast %19 : vector<8x1xf32> to vector<8x8xf32>
    %28 = arith.cmpf olt, %26, %27 : vector<8x8xf32>
    %29 = arith.andi %10, %28 : vector<8x8xi1>
    %30 = arith.extui %29 : vector<8x8xi1> to vector<8x8xi32>
    %31 = arith.sitofp %30 : vector<8x8xi32> to vector<8x8xf32>
    %cst_15 = arith.constant dense<0.000000e+00> : vector<8xf32>
    %32 = vector.multi_reduction <add>, %31, %cst_15 [1] : vector<8x8xf32> to vector<8xf32>
    %33 = vector.shape_cast %32 : vector<8xf32> to vector<8x1xf32>
    %34 = arith.extui %24 : vector<8x8xi1> to vector<8x8xi32>
    %35 = arith.sitofp %34 : vector<8x8xi32> to vector<8x8xf32>
    %cst_16 = arith.constant dense<0.000000e+00> : vector<8xf32>
    %36 = vector.multi_reduction <add>, %35, %cst_16 [1] : vector<8x8xf32> to vector<8xf32>
    %37 = vector.shape_cast %36 : vector<8xf32> to vector<8x1xf32>
    %cst_17 = arith.constant 5.000000e-01 : f32
    %38 = vector.broadcast %cst_17 : f32 to vector<8x8xf32>
    %39 = arith.subf %2, %38 : vector<8x8xf32>
    %cst_18 = arith.constant -2.000000e+00 : f32
    %40 = vector.broadcast %cst_18 : f32 to vector<8x8xf32>
    %41 = arith.mulf %40, %39 : vector<8x8xf32>
    %cst_19 = arith.constant 4.000000e+01 : f32
    %42 = vector.broadcast %cst_19 : f32 to vector<8x8xf32>
    %43 = arith.mulf %42, %39 : vector<8x8xf32>
    %cst_20 = arith.constant -1.000000e+30 : f32
    %44 = vector.broadcast %cst_20 : f32 to vector<8x8xf32>
    %45 = arith.select %24, %43, %44 : vector<8x8xi1>, vector<8x8xf32>
    %46 = arith.select %29, %41, %45 : vector<8x8xi1>, vector<8x8xf32>
    %47 = math.exp %46 : vector<8x8xf32>
    %cst_21 = arith.constant 0.000000e+00 : f32
    %48 = vector.broadcast %cst_21 : f32 to vector<8x8xf32>
    %49 = arith.select %29, %47, %48 : vector<8x8xi1>, vector<8x8xf32>
    %cst_22 = arith.constant dense<0.000000e+00> : vector<8xf32>
    %50 = vector.multi_reduction <add>, %49, %cst_22 [1] : vector<8x8xf32> to vector<8xf32>
    %51 = vector.shape_cast %50 : vector<8xf32> to vector<8x1xf32>
    %cst_23 = arith.constant 0.000000e+00 : f32
    %52 = vector.broadcast %cst_23 : f32 to vector<8x8xf32>
    %53 = arith.select %24, %47, %52 : vector<8x8xi1>, vector<8x8xf32>
    %cst_24 = arith.constant dense<0.000000e+00> : vector<8xf32>
    %54 = vector.multi_reduction <add>, %53, %cst_24 [1] : vector<8x8xf32> to vector<8xf32>
    %55 = vector.shape_cast %54 : vector<8xf32> to vector<8x1xf32>
    %cst_25 = arith.constant 1.000000e+00 : f32
    %56 = vector.broadcast %cst_25 : f32 to vector<8x1xf32>
    %57 = arith.addf %56, %51 : vector<8x1xf32>
    %58 = math.log %57 : vector<8x1xf32>
    %cst_26 = arith.constant 5.000000e-01 : f32
    %59 = vector.broadcast %cst_26 : f32 to vector<8x1xf32>
    %60 = arith.mulf %59, %58 : vector<8x1xf32>
    %cst_27 = arith.constant 1.000000e+00 : f32
    %61 = vector.broadcast %cst_27 : f32 to vector<8x1xf32>
    %62 = arith.addf %61, %55 : vector<8x1xf32>
    %63 = math.log %62 : vector<8x1xf32>
    %cst_28 = arith.constant 2.500000e-02 : f32
    %64 = vector.broadcast %cst_28 : f32 to vector<8x1xf32>
    %65 = arith.mulf %64, %63 : vector<8x1xf32>
    %cst_29 = arith.constant 1.000000e+00 : f32
    %66 = vector.broadcast %cst_29 : f32 to vector<8x1xf32>
    %67 = arith.cmpf oge, %33, %66 : vector<8x1xf32>
    %cst_30 = arith.constant 1.000000e+00 : f32
    %68 = vector.broadcast %cst_30 : f32 to vector<8x1xf32>
    %69 = arith.cmpf oge, %37, %68 : vector<8x1xf32>
    %70 = arith.andi %67, %69 : vector<8x1xi1>
    %71 = arith.addf %60, %65 : vector<8x1xf32>
    %cst_31 = arith.constant 0.000000e+00 : f32
    %72 = vector.broadcast %cst_31 : f32 to vector<8x1xf32>
    %73 = arith.select %70, %71, %72 : vector<8x1xi1>, vector<8x1xf32>
    %c0_32 = arith.constant 0 : index
    %c0_33 = arith.constant 0 : index
    %74 = vector.load %arg5[%c0_32, %c0_33] : memref<8x1xf32, #tpu.memory_space<vmem>>, vector<8x1xf32>
    tpu.vector_store %arg5[%c0_32, %c0_33], %73 {strides = array<i32>} : memref<8x1xf32, #tpu.memory_space<vmem>>, vector<8x1xf32>,
    return
  }
  func.func @transform_0(%arg0: i32) -> (i32, i32) {
    %c0_i32 = arith.constant 0 : i32
    %c0_i32_0 = arith.constant 0 : i32
    return %arg0, %c0_i32 : i32, i32
  }
  func.func @transform_1(%arg0: i32) -> (i32, i32) {
    %c0_i32 = arith.constant 0 : i32
    %c0_i32_0 = arith.constant 0 : i32
    %c0_i32_1 = arith.constant 0 : i32
    return %c0_i32, %c0_i32_0 : i32, i32
  }
  func.func @transform_2(%arg0: i32) -> (i32, i32) {
    %c0_i32 = arith.constant 0 : i32
    %c0_i32_0 = arith.constant 0 : i32
    return %arg0, %c0_i32 : i32, i32
  }
  func.func @transform_3(%arg0: i32) -> (i32, i32) {
    %c0_i32 = arith.constant 0 : i32
    %c0_i32_0 = arith.constant 0 : i32
    %c0_i32_1 = arith.constant 0 : i32
    return %c0_i32, %c0_i32_0 : i32, i32
  }
  func.func @transform_4(%arg0: i32) -> (i32, i32) {
    %c0_i32 = arith.constant 0 : i32
    %c0_i32_0 = arith.constant 0 : i32
    return %arg0, %c0_i32 : i32, i32
  }
}

</mosaic_0001>

<llo_original>
// kernel: tpu_custom_call.1
$region0: #{tpu_custom_call.1}
  #allocation0 [shape = 'u32[]', space=smem, size = 0x4, offset = 0x4, fixed_abs, tag = 'smem constant byte address 0x4 - core index']
  #allocation1 [shape = 'u32[144,128]{1,0:T(1,128)}', space=vmem, size = 0x12000, scoped, tag = 'internal scratch']
  %s0 = inlined_call_operand.vmem [shape: f32[8,128], index: 0, kind: input, shape index: {}]
  %s1 = inlined_call_operand.hbm [shape: f32[8,128], index: 1, kind: input, shape index: {}]
  %s2 = inlined_call_operand.vmem [shape: s32[8,1], index: 2, kind: input, shape index: {}]
  %s3 = inlined_call_operand.vmem [shape: s32[1,8], index: 3, kind: input, shape index: {}]
  %s4 = inlined_call_operand.vmem [shape: f32[8,1], index: 4, kind: output, shape index: {}]
  %s5 = sld [smem:[#allocation0]]
  $region30: #{tpu_custom_call.1} parent=0
    _
  %s7 = ssub.s32 1, %s5
  %s8 = scalar_select 0, %s7, %s5
  $region1: #{tpu_custom_call.1} parent=0
    #allocation2 [shape = 'u8[4096]{0}', space=vmem, size = 0x1000, scoped, tag = 'input window, operand 1, single buffered']
    #allocation3 [shape = 's32[1]{0}', space=sflag, size = 0x4, scoped, tag = 'scoped memory for tpu_custom_call.1']
    %9 = vsyncpa [#allocation3], 0
    // Predicated region
    $region2: #{tpu_custom_call.1} parent=1 // pred_check
      _
    $region3: #{tpu_custom_call.1} parent=1 // pred_check_branch
      %11 = sbr.rel (0) target = $region5
    $region4: #{tpu_custom_call.1} parent=1 // pred_region
      _
    $region5: #{tpu_custom_call.1} parent=1 // pred_fallthru
      _
    // Predicated region
    $region6: #{tpu_custom_call.1} parent=1 // pred_check
      _
    $region7: #{tpu_custom_call.1} parent=1 // pred_check_branch
      %13 = sbr.rel (0) target = $region9
    $region8: #{tpu_custom_call.1} parent=1 // pred_region
      %s15 = ssub.s32 128, 128
      %16 = vsyncadd [#allocation3], %s15
      %s18 = sshll.u32 [#allocation2], 4
      %s19 = int_to_ptr.vmem [resolvable:$true] %s18
      %21 = dma.hbm_to_vmem [thread:$0]  %s1, 128, %s19, [#allocation3]
    $region9: #{tpu_custom_call.1} parent=1 // pred_fallthru
      _
    // Predicated region
    $region10: #{tpu_custom_call.1} parent=1 // pred_check
      _
    $region11: #{tpu_custom_call.1} parent=1 // pred_check_branch
      %23 = sbr.rel (0) target = $region13
    $region12: #{tpu_custom_call.1} parent=1 // pred_region
      _
    $region13: #{tpu_custom_call.1} parent=1 // pred_fallthru
      _
    // Predicated region
    $region14: #{tpu_custom_call.1} parent=1 // pred_check
      _
    $region15: #{tpu_custom_call.1} parent=1 // pred_check_branch
      %25 = sbr.rel (0) target = $region17
    $region16: #{tpu_custom_call.1} parent=1 // pred_region
      _
    $region17: #{tpu_custom_call.1} parent=1 // pred_fallthru
      _
    // Predicated region
    $region18: #{tpu_custom_call.1} parent=1 // pred_check
      _
    $region19: #{tpu_custom_call.1} parent=1 // pred_check_branch
      %27 = sbr.rel (0) target = $region21
    $region20: #{tpu_custom_call.1} parent=1 // pred_region
      %28 = dma.done [#allocation3], 128
    $region21: #{tpu_custom_call.1} parent=1 // pred_fallthru
      _
    %v29 = vld [vmem:[%s0] sm:$0xff]
    %v30 = vld [vmem:[#allocation2] sm:$0xff]
    %31 = vmatprep.subr.mxu0 0.0
    %32 = vmatpush1.xpose.msra.mxu0 0.0
    %33 = vmatprep.subr.mxu0 0.0
    %34 = vmatpush1.xpose.msra.mxu0 0.0
    %35 = vmatprep.subr.mxu0 0.0
    %36 = vmatpush1.xpose.msra.mxu0 0.0
    %37 = vmatprep.subr.mxu0 0.0
    %38 = vmatpush1.xpose.msra.mxu0 0.0
    %39 = vmatprep.subr.mxu0 0.0
    %40 = vmatpush1.xpose.msra.mxu0 0.0
    %41 = vmatprep.subr.mxu0 0.0
    %42 = vmatpush1.xpose.msra.mxu0 0.0
    %43 = vmatprep.subr.mxu0 0.0
    %44 = vmatpush1.xpose.msra.mxu0 0.0
    %45 = vmatprep.subr.mxu0 0.0
    %46 = vmatpush1.xpose.msra.mxu0 0.0
    %47 = vmatprep.subr.mxu0 0.0
    %48 = vmatpush1.xpose.msra.mxu0 0.0
    %49 = vmatprep.subr.mxu0 0.0
    %50 = vmatpush1.xpose.msra.mxu0 0.0
    %51 = vmatprep.subr.mxu0 0.0
    %52 = vmatpush1.xpose.msra.mxu0 0.0
    %53 = vmatprep.subr.mxu0 0.0
    %54 = vmatpush1.xpose.msra.mxu0 0.0
    %55 = vmatprep.subr.mxu0 0.0
    %56 = vmatpush1.xpose.msra.mxu0 0.0
    %57 = vmatprep.subr.mxu0 0.0
    %58 = vmatpush1.xpose.msra.mxu0 0.0
    %59 = vmatprep.subr.mxu0 0.0
    %60 = vmatpush1.xpose.msra.mxu0 0.0
    %61 = vmatprep.subr.mxu0 0.0
    %62 = vmatpush1.xpose.msra.mxu0 %v30
    %63 = vmatprep.subr.mxu0 0.0
    %64 = vmatpush2.xpose.msra.mxu0 0.0
    %65 = vmatprep.subr.mxu0 0.0
    %66 = vmatpush2.xpose.msra.mxu0 0.0
    %67 = vmatprep.subr.mxu0 0.0
    %68 = vmatpush2.xpose.msra.mxu0 0.0
    %69 = vmatprep.subr.mxu0 0.0
    %70 = vmatpush2.xpose.msra.mxu0 0.0
    %71 = vmatprep.subr.mxu0 0.0
    %72 = vmatpush2.xpose.msra.mxu0 0.0
    %73 = vmatprep.subr.mxu0 0.0
    %74 = vmatpush2.xpose.msra.mxu0 0.0
    %75 = vmatprep.subr.mxu0 0.0
    %76 = vmatpush2.xpose.msra.mxu0 0.0
    %77 = vmatprep.subr.mxu0 0.0
    %78 = vmatpush2.xpose.msra.mxu0 0.0
    %79 = vmatprep.subr.mxu0 0.0
    %80 = vmatpush2.xpose.msra.mxu0 0.0
    %81 = vmatprep.subr.mxu0 0.0
    %82 = vmatpush2.xpose.msra.mxu0 0.0
    %83 = vmatprep.subr.mxu0 0.0
    %84 = vmatpush2.xpose.msra.mxu0 0.0
    %85 = vmatprep.subr.mxu0 0.0
    %86 = vmatpush2.xpose.msra.mxu0 0.0
    %87 = vmatprep.subr.mxu0 0.0
    %88 = vmatpush2.xpose.msra.mxu0 0.0
    %89 = vmatprep.subr.mxu0 0.0
    %90 = vmatpush2.xpose.msra.mxu0 0.0
    %91 = vmatprep.subr.mxu0 0.0
    %92 = vmatpush2.xpose.msra.mxu0 0.0
    %93 = vmatprep.subr.mxu0 0.0
    %94 = vmatpush2.xpose.msra.mxu0 0.0
    %95 = vmatprep.mubr.f32.mxu0 0.0
    %96 = vmatmul.mubr.f32.gmra.mxu0 %v29
    %v97 = vpop.f32.mrf.mxu0
    %v98 = vadd.f32 0.0, %v97
    %v99 = vpop.f32.mrf.mxu0
    %100 = vdwg.mxu0
    %v101 = vld [vmem:[%s2] sm:$0xff]
    %v102 = vld [vmem:[%s3] sm:$0x1]
    %103 = vset.pattern.permute.xlu0 0
    %104 = vperm.xlu0 %103, %v101
    %v105 = vpop.permute.xlu0 %104
    %v106 = vlaneseq
    %v107 = vshrl.u32 %v106, 7
    %v108 = vsub.s32 0, %v107
    %v109 = vrot.slane %v102, %v108
    %vm110 = vcmp.eq.s32.totalorder %v105, %v109
    %vm111 = vcmp.lt.f32.partialorder %v98, 0.99999
    %vm112 = vmand %vm110, %vm111
    %vm113 = vmxor %vm110, 1
    %v114 = vsel %vm112, %v98, inf
    %vm115 = vcmask 64512
    %v116 = vsel %vm115, %v114, inf
    %117 = vmin.xlane.f32.xlu0 %v116
    %v118 = vpop.xlane.xlu0 %117
    %v119 = vsel %vm113, %v98, -inf
    %v120 = vsel %vm115, %v119, -inf
    %121 = vmax.xlane.f32.xlu0 %v120
    %v122 = vpop.xlane.xlu0 %121
    %v123 = vadd.f32 %v98, 0.1
    %vm124 = vcmp.gt.f32.partialorder %v123, %v118
    %vm125 = vmand %vm113, %vm124
    %v126 = vsub.f32 %v98, 0.1
    %vm127 = vcmp.lt.f32.partialorder %v126, %v122
    %vm128 = vmand %vm112, %vm127
    %v129 = vsel %vm128, 1, 0
    %v130 = vcvt.s32.f32 %v129
    %v131 = vsel %vm115, %v130, 0.0
    %132 = vadd.xlane.f32.xlu0 %v131
    %v133 = vpop.xlane.xlu0 %132
    %v134 = vsel %vm125, 1, 0
    %v135 = vcvt.s32.f32 %v134
    %v136 = vsel %vm115, %v135, 0.0
    %137 = vadd.xlane.f32.xlu0 %v136
    %v138 = vpop.xlane.xlu0 %137
    %v139 = vsub.f32 %v98, 0.5
    %v140 = vmul.f32 %v139, -2.0
    %v141 = vmul.f32 %v139, 40.0
    %v142 = vsel %vm125, %v141, -1e+30
    %v143 = vsel %vm128, %v140, %v142
    %v144 = vmul.f32 %v143, 1.442695
    %v145 = vpow.pop %v144
    %v146 = vsel %vm128, %v145, 0.0
    %v147 = vsel %vm115, %v146, 0.0
    %148 = vadd.xlane.f32.xlu0 %v147
    %v149 = vpop.xlane.xlu0 %148
    %v150 = vsel %vm125, %v145, 0.0
    %v151 = vsel %vm115, %v150, 0.0
    %152 = vadd.xlane.f32.xlu0 %v151
    %v153 = vpop.xlane.xlu0 %152
    %v154 = vadd.f32 %v149, 1.0
    %v155 = vlog2.pop %v154
    %v156 = vmul.f32 %v155, 0.6931472
    %v157 = vmul.f32 %v156, 0.5
    %v158 = vadd.f32 %v153, 1.0
    %v159 = vlog2.pop %v158
    %v160 = vmul.f32 %v159, 0.6931472
    %v161 = vmul.f32 %v160, 0.025
    %vm162 = vcmp.ge.f32.partialorder %v133, 1.0
    %vm163 = vcmp.ge.f32.partialorder %v138, 1.0
    %vm164 = vmand %vm162, %vm163
    %v165 = vadd.f32 %v157, %v161
    %v166 = vsel %vm164, %v165, 0.0
    %vm167 = vcmask 7168
    %168 = vst.msk [vmem:[%s4] sm:$0xff] %vm167, %v166
    // Predicated region
    $region22: #{tpu_custom_call.1} parent=1 // pred_check
      _
    $region23: #{tpu_custom_call.1} parent=1 // pred_check_branch
      %170 = sbr.rel (0) target = $region25
    $region24: #{tpu_custom_call.1} parent=1 // pred_region
      _
    $region25: #{tpu_custom_call.1} parent=1 // pred_fallthru
      _
    // Predicated region
    $region26: #{tpu_custom_call.1} parent=1 // pred_check
      _
    $region27: #{tpu_custom_call.1} parent=1 // pred_check_branch
      %172 = sbr.rel (0) target = $region29
    $region28: #{tpu_custom_call.1} parent=1 // pred_region
      _
    $region29: #{tpu_custom_call.1} parent=1 // pred_fallthru
      _
    %173 = vsyncpa [#allocation3], 1

</llo_original>
